<compile_context>
chip_gen: v5e
topology: v5e:2x2
jax: 0.10.0
libtpu: 0.0.40
codegen_flags: <defaults>
</compile_context>

<pallas_src>
import functools
import math

import jax
import jax.numpy as jnp
from jax.experimental import pallas as pl
from jax.experimental.pallas import tpu as pltpu


def build_positional_encoding(d_model: int, max_len: int = 5000) -> jnp.ndarray:
    """Sinusoidal PE table, shape (max_len, d_model) float32 (matches __init__).

    The PyTorch buffer carries an extra singleton batch axis purely for
    broadcasting; the kernel does the broadcast itself, so we keep it 2-D.
    """
    # Note: like the PyTorch original, this requires an even d_model.
    assert d_model % 2 == 0, "d_model must be even (same as the PyTorch module)"
    pos = jnp.arange(max_len, dtype=jnp.float32)[:, None]                 # (max_len, 1)
    div = jnp.exp(jnp.arange(0, d_model, 2, dtype=jnp.float32)
                  * -(math.log(10000.0) / d_model))                       # (d_model//2,)
    pe = jnp.zeros((max_len, d_model), dtype=jnp.float32)
    pe = pe.at[:, 0::2].set(jnp.sin(pos * div))
    pe = pe.at[:, 1::2].set(jnp.cos(pos * div))
    return pe                                                             # (max_len, d_model)


def _pos_enc_kernel(x_ref, pe_ref, o_ref, *, batch: int):
    # x_ref / o_ref: (ts, batch * d_model)   -- seq on sublanes, lanes dense
    # pe_ref:        (ts, d_model)
    pe = pe_ref[...]
    if batch > 1:
        # Broadcast over batch along the lane axis: [pe | pe | ... | pe].
        # Column k = b*D + d of x gets pe[:, d]  (exactly x + pe[:S] semantics).
        pe = jnp.concatenate([pe] * batch, axis=1)
    o_ref[...] = (x_ref[...] + pe).astype(o_ref.dtype)


def positional_encoding(x: jnp.ndarray, pe: jnp.ndarray,
                        *, vmem_budget_bytes: int = 24 * 1024 * 1024) -> jnp.ndarray:
    """x: (S, B, D); pe: (max_len, D). Returns x + pe[:S] broadcast over batch."""
    S, B, D = x.shape
    max_len, d_model = pe.shape
    assert d_model == D and max_len >= S

    BD = B * D
    # Free (layout-preserving) 2-D view: no data movement, just merges trailing dims.
    x2 = x.reshape(S, BD)

    # Tile sizing: double-buffered (x_tile + out_tile + pe_tile) must fit the
    # VMEM budget. Prefer large seq tiles (multiple of 8 sublanes).
    itemsize = jnp.dtype(x.dtype).itemsize
    bytes_per_row = (2 * BD + D) * itemsize          # x row + out row + pe row
    max_rows = max(1, vmem_budget_bytes // (2 * bytes_per_row))
    if S <= 8:
        ts = S                                       # full-extent block (always legal)
    else:
        ts = min(S, max_rows, 1024)
        ts = max(8, (ts // 8) * 8)                   # keep sublane-aligned tiles
    grid = (pl.cdiv(S, ts),)

    out2 = pl.pallas_call(
        functools.partial(_pos_enc_kernel, batch=B),
        out_shape=jax.ShapeDtypeStruct((S, BD), x.dtype),
        grid_spec=pltpu.PrefetchScalarGridSpec(
            num_scalar_prefetch=0,
            grid=grid,
            in_specs=[
                pl.BlockSpec((ts, BD), lambda i: (i, 0)),   # x view
                pl.BlockSpec((ts, D), lambda i: (i, 0)),    # full pe buffer; only
                                                            # first ceil(S/ts) blocks touched
            ],
            out_specs=pl.BlockSpec((ts, BD), lambda i: (i, 0)),
        ),
        compiler_params=pltpu.CompilerParams(
            dimension_semantics=("parallel",),       # lets v7x shard steps across 2 TCs
            vmem_limit_bytes=48 * 1024 * 1024,       # > v5e's 16 MiB default, < v7x's 64 MiB physical
        ),
    )(x2, pe)

    return out2.reshape(S, B, D)


if __name__ == "__main__":
    # Small, module-consistent demo shapes; D=128 keeps the lane axis dense.
    seq_len, batch, d_model = 16, 2, 128
    max_len = 64

    key = jax.random.PRNGKey(0)
    x = jax.random.normal(key, (seq_len, batch, d_model), dtype=jnp.float32)
    pe = build_positional_encoding(d_model, max_len=max_len)

    out = jax.block_until_ready(positional_encoding(x, pe))

    # Pure-JAX reference with the exact PyTorch forward semantics.
    ref = x + pe[:seq_len][:, None, :]
    assert out.shape == (seq_len, batch, d_model)
    assert jnp.allclose(out, ref, atol=1e-6), "mismatch vs reference"

    print("KERNEL_OK")
</pallas_src>

<mosaic_0001>
module attributes {stable_mosaic.version = 11 : i64} {
  func.func @_pos_enc_kernel(%arg0: i32, %arg1: memref<16x256xf32, #tpu.memory_space<vmem>>, %arg2: memref<16x128xf32, #tpu.memory_space<vmem>>, %arg3: memref<16x256xf32, #tpu.memory_space<vmem>>) attributes {dimension_semantics = [#tpu.dimension_semantics<parallel>], iteration_bounds = array<i64: 1>, scalar_prefetch = 0 : i64, scratch_operands = 0 : i64, tpu.core_type = #tpu.core_type<tc>, window_params = [{transform_indices = @transform_0, window_bounds = array<i64: 16, 256>}, {transform_indices = @transform_1, window_bounds = array<i64: 16, 128>}, {transform_indices = @transform_2, window_bounds = array<i64: 16, 256>}]} {
    %c0 = arith.constant 0 : index
    %c0_0 = arith.constant 0 : index
    %0 = vector.load %arg2[%c0, %c0_0] : memref<16x128xf32, #tpu.memory_space<vmem>>, vector<16x128xf32>
    %1 = tpu.concatenate %0, %0 in 1 : vector<16x128xf32>, vector<16x128xf32> -> vector<16x256xf32>
    %c0_1 = arith.constant 0 : index
    %c0_2 = arith.constant 0 : index
    %2 = vector.load %arg1[%c0_1, %c0_2] : memref<16x256xf32, #tpu.memory_space<vmem>>, vector<16x256xf32>
    %3 = arith.addf %2, %1 : vector<16x256xf32>
    %c0_3 = arith.constant 0 : index
    %c0_4 = arith.constant 0 : index
    %4 = vector.load %arg3[%c0_3, %c0_4] : memref<16x256xf32, #tpu.memory_space<vmem>>, vector<16x256xf32>
    tpu.vector_store %arg3[%c0_3, %c0_4], %3 {strides = array<i32>} : memref<16x256xf32, #tpu.memory_space<vmem>>, vector<16x256xf32>,
    return
  }
  func.func @transform_0(%arg0: i32) -> (i32, i32) {
    %c0_i32 = arith.constant 0 : i32
    %c0_i32_0 = arith.constant 0 : i32
    return %arg0, %c0_i32 : i32, i32
  }
  func.func @transform_1(%arg0: i32) -> (i32, i32) {
    %c0_i32 = arith.constant 0 : i32
    %c0_i32_0 = arith.constant 0 : i32
    return %arg0, %c0_i32 : i32, i32
  }
  func.func @transform_2(%arg0: i32) -> (i32, i32) {
    %c0_i32 = arith.constant 0 : i32
    %c0_i32_0 = arith.constant 0 : i32
    return %arg0, %c0_i32 : i32, i32
  }
}

</mosaic_0001>

<llo_original>
// kernel: tpu_custom_call.1
$region0: #{tpu_custom_call.1}
  #allocation0 [shape = 'u32[]', space=smem, size = 0x4, offset = 0x4, fixed_abs, tag = 'smem constant byte address 0x4 - core index']
  #allocation1 [shape = 'u32[72,128]{1,0:T(1,128)}', space=vmem, size = 0x9000, scoped, tag = 'internal scratch']
  %s0 = inlined_call_operand.hbm [shape: f32[16,256], index: 0, kind: input, shape index: {}]
  %s1 = inlined_call_operand.hbm [shape: f32[64,128], index: 1, kind: input, shape index: {}]
  %s2 = inlined_call_operand.hbm [shape: f32[16,256], index: 2, kind: output, shape index: {}]
  %s3 = sld [smem:[#allocation0]]
  $region26: #{tpu_custom_call.1} parent=0
    _
  %s5 = ssub.s32 1, %s3
  %s6 = scalar_select 0, %s5, %s3
  $region1: #{tpu_custom_call.1} parent=0
    #allocation2 [shape = 'u8[16384]{0}', space=vmem, size = 0x4000, scoped, tag = 'input window, operand 0, single buffered']
    #allocation3 [shape = 's32[1]{0}', space=sflag, size = 0x4, scoped, tag = 'scoped memory for tpu_custom_call.1']
    #allocation4 [shape = 's32[1]{0}', space=sflag, size = 0x4, scoped, tag = 'scoped memory for tpu_custom_call.1']
    #allocation5 [shape = 'u8[8192]{0}', space=vmem, size = 0x2000, scoped, tag = 'input window, operand 1, single buffered']
    #allocation6 [shape = 's32[1]{0}', space=sflag, size = 0x4, scoped, tag = 'scoped memory for tpu_custom_call.1']
    #allocation7 [shape = 'u8[16384]{0}', space=vmem, size = 0x4000, scoped, tag = 'output window, operand 0, single buffered']
    %7 = vsyncpa [#allocation3], 0
    %8 = vsyncpa [#allocation6], 0
    %9 = vsyncpa [#allocation4], 0
    // Predicated region
    $region2: #{tpu_custom_call.1} parent=1 // pred_check
      _
    $region3: #{tpu_custom_call.1} parent=1 // pred_check_branch
      %11 = sbr.rel (0) target = $region5
    $region4: #{tpu_custom_call.1} parent=1 // pred_region
      %13 = vsyncadd [#allocation3], 0
      %s14 = sshll.u32 %s0, 4
      %s15 = int_to_ptr.hbm [resolvable:$true] %s14
      %s16 = sshll.u32 [#allocation2], 4
      %s17 = int_to_ptr.vmem [resolvable:$true] %s16
      %22 = dma.hbm_to_vmem [thread:$0]  %s15, 512, %s17, [#allocation3], 256, 256, 16
    $region5: #{tpu_custom_call.1} parent=1 // pred_fallthru
      _
    // Predicated region
    $region6: #{tpu_custom_call.1} parent=1 // pred_check
      _
    $region7: #{tpu_custom_call.1} parent=1 // pred_check_branch
      %24 = sbr.rel (0) target = $region9
    $region8: #{tpu_custom_call.1} parent=1 // pred_region
      %26 = vsyncadd [#allocation6], 0
      %s27 = sshll.u32 %s1, 4
      %s28 = int_to_ptr.hbm [resolvable:$true] %s27
      %s29 = sshll.u32 [#allocation5], 4
      %s30 = int_to_ptr.vmem [resolvable:$true] %s29
      %35 = dma.hbm_to_vmem [thread:$0]  %s28, 256, %s30, [#allocation6], 128, 128, 8
    $region9: #{tpu_custom_call.1} parent=1 // pred_fallthru
      _
    // Predicated region
    $region10: #{tpu_custom_call.1} parent=1 // pred_check
      _
    $region11: #{tpu_custom_call.1} parent=1 // pred_check_branch
      %37 = sbr.rel (0) target = $region13
    $region12: #{tpu_custom_call.1} parent=1 // pred_region
      %39 = dma.done [#allocation3], 512
    $region13: #{tpu_custom_call.1} parent=1 // pred_fallthru
      _
    // Predicated region
    $region14: #{tpu_custom_call.1} parent=1 // pred_check
      _
    $region15: #{tpu_custom_call.1} parent=1 // pred_check_branch
      %41 = sbr.rel (0) target = $region17
    $region16: #{tpu_custom_call.1} parent=1 // pred_region
      %43 = dma.done [#allocation6], 256
    $region17: #{tpu_custom_call.1} parent=1 // pred_fallthru
      _
    %v44 = vld [vmem:[#allocation5] sm:$0xff]
    %v45 = vld [vmem:[#allocation5 + $0x8] sm:$0xff]
    %v46 = vld [vmem:[#allocation2] sm:$0xff]
    %v47 = vld [vmem:[#allocation2 + $0x8] sm:$0xff]
    %v48 = vld [vmem:[#allocation2 + $0x10] sm:$0xff]
    %v49 = vld [vmem:[#allocation2 + $0x18] sm:$0xff]
    %v50 = vadd.f32 %v46, %v44
    %v51 = vadd.f32 %v47, %v44
    %v52 = vadd.f32 %v48, %v45
    %v53 = vadd.f32 %v49, %v45
    %54 = vst [vmem:[#allocation7] sm:$0xff] %v50
    %55 = vst [vmem:[#allocation7 + $0x8] sm:$0xff] %v51
    %56 = vst [vmem:[#allocation7 + $0x10] sm:$0xff] %v52
    %57 = vst [vmem:[#allocation7 + $0x18] sm:$0xff] %v53
    // Predicated region
    $region18: #{tpu_custom_call.1} parent=1 // pred_check
      _
    $region19: #{tpu_custom_call.1} parent=1 // pred_check_branch
      %59 = sbr.rel (0) target = $region21
    $region20: #{tpu_custom_call.1} parent=1 // pred_region
      %61 = vsyncadd [#allocation4], 0
      %s62 = sshll.u32 [#allocation7], 4
      %s63 = int_to_ptr.vmem [resolvable:$true] %s62
      %s64 = sshll.u32 %s2, 4
      %s65 = int_to_ptr.hbm [resolvable:$true] %s64
      %70 = dma.vmem_to_hbm [thread:$0]  %s63, 512, %s65, [#allocation4], 256, 256, 16
    $region21: #{tpu_custom_call.1} parent=1 // pred_fallthru
      _
    // Predicated region
    $region22: #{tpu_custom_call.1} parent=1 // pred_check
      _
    $region23: #{tpu_custom_call.1} parent=1 // pred_check_branch
      %72 = sbr.rel (0) target = $region25
    $region24: #{tpu_custom_call.1} parent=1 // pred_region
      %74 = dma.done [#allocation4], 512
    $region25: #{tpu_custom_call.1} parent=1 // pred_fallthru
      _
    %75 = vsyncpa [#allocation3], 1
    %76 = vsyncpa [#allocation6], 1
    %77 = vsyncpa [#allocation4], 1

</llo_original>
